<compile_context>
chip_gen: v7x
topology: tpu7x:2x2x1
jax: 0.10.0
libtpu: 0.0.40
codegen_flags: <defaults>
</compile_context>

<pallas_src>
import jax
import jax.numpy as jnp
from jax.experimental import pallas as pl
from jax.experimental.pallas import tpu as pltpu

IN_DIM = 28 * 28     # 784
HID_DIM = 128
OUT_DIM = 10
OUT_PAD = 128        # lane-dense padded logits width


def _round_up(n, m):
    return ((n + m - 1) // m) * m


def mlp_relu_kernel(clip_ref, node_ref, x_ref, w0_ref, b0_ref, w1_ref, o_ref):
    # clip_ref: (2,) f32 SMEM [min_val, max_val]; node_ref: (1,) i32 SMEM, -1 == whole layer.
    x = x_ref[...].astype(jnp.bfloat16)                        # in-kernel downcast, no extra HBM pass
    h = jnp.dot(x, w0_ref[...], preferred_element_type=jnp.float32)   # MXU, f32 accumulate
    h = h + b0_ref[...]                                        # f32 bias (1, 128)
    h = jnp.maximum(h, 0.0)                                    # ReLU
    # PerturbationLayer: clamp whole layer (node < 0) or only hidden column `node`.
    clipped = jnp.clip(h, clip_ref[0], clip_ref[1])            # +/-inf bounds -> identity
    node = node_ref[0]
    col = jax.lax.broadcasted_iota(jnp.int32, h.shape, 1)
    h = jnp.where((node < 0) | (col == node), clipped, h)
    y = jnp.dot(h.astype(jnp.bfloat16), w1_ref[...],
                preferred_element_type=jnp.float32)            # (tile_b, 128) f32 acc
    o_ref[...] = y.astype(o_ref.dtype)                         # bf16 lane-dense store


def prepare_params(w0, b0, w1):
    """One-time weight prep (hoisted out of the per-call forward path)."""
    w0_bf = jnp.asarray(w0, jnp.bfloat16)                                   # (784, 128)
    b0_f32 = jnp.asarray(b0, jnp.float32).reshape(1, HID_DIM)               # (1, 128)
    w1_bf = jnp.pad(jnp.asarray(w1, jnp.bfloat16),
                    ((0, 0), (0, OUT_PAD - OUT_DIM)))                       # (128, 128)
    return w0_bf, b0_f32, w1_bf


def model_relu_forward(x, params, min_val=-jnp.inf, max_val=jnp.inf,
                       node_idx=None, tile_b=2048):
    w0_bf, b0_f32, w1_bf = params
    x = jnp.asarray(x)
    B = x.shape[0]
    # Tile rows: multiple of 16 (bf16 output sublane packing), never bigger than needed.
    tile_b = max(16, min(_round_up(tile_b, 16), _round_up(B, 16)))
    grid_b = pl.cdiv(B, tile_b)

    clip = jnp.array([min_val, max_val], dtype=jnp.float32)
    node = jnp.array([-1 if node_idx is None else int(node_idx)], dtype=jnp.int32)

    x_bytes = x.dtype.itemsize
    weight_bytes = IN_DIM * HID_DIM * 2 + HID_DIM * 4 + HID_DIM * OUT_PAD * 2
    flops = 2 * B * IN_DIM * HID_DIM + 2 * B * HID_DIM * OUT_PAD
    bytes_accessed = B * IN_DIM * x_bytes + weight_bytes + B * OUT_PAD * 2

    # Double-buffered streams + resident weights + in-body temporaries, plus slack.
    vmem_need = (2 * tile_b * IN_DIM * x_bytes            # x stream
                 + 2 * tile_b * OUT_PAD * 2               # bf16 out stream
                 + 2 * weight_bytes                       # resident weights (double-buffered)
                 + tile_b * (IN_DIM * 2 + HID_DIM * 16))  # bf16 x copy + f32 hidden temps
    vmem_limit = int(min(vmem_need + (8 << 20), 56 << 20))

    out = pl.pallas_call(
        mlp_relu_kernel,
        out_shape=jax.ShapeDtypeStruct((B, OUT_PAD), jnp.bfloat16),
        grid=(grid_b,),
        in_specs=[
            pl.BlockSpec(memory_space=pltpu.SMEM),                  # clip scalars
            pl.BlockSpec(memory_space=pltpu.SMEM),                  # node_idx scalar
            pl.BlockSpec((tile_b, IN_DIM), lambda i: (i, 0)),       # x tile (streamed)
            pl.BlockSpec((IN_DIM, HID_DIM), lambda i: (0, 0)),      # W0 (VMEM-resident)
            pl.BlockSpec((1, HID_DIM), lambda i: (0, 0)),           # b0 (VMEM-resident)
            pl.BlockSpec((HID_DIM, OUT_PAD), lambda i: (0, 0)),     # W1 padded (resident)
        ],
        out_specs=pl.BlockSpec((tile_b, OUT_PAD), lambda i: (i, 0)),
        compiler_params=pltpu.CompilerParams(
            dimension_semantics=("parallel",),                      # megacore sharding on v7x
            vmem_limit_bytes=vmem_limit,
        ),
        cost_estimate=pl.CostEstimate(flops=flops, transcendentals=0,
                                      bytes_accessed=bytes_accessed),
    )(clip, node, x, w0_bf, b0_f32, w1_bf)

    return out[:, :OUT_DIM].astype(jnp.float32)


def init_params(key):
    # Deterministic synthetic init (PyTorch-like uniform fan-in scaling).
    k0, k1, k2 = jax.random.split(key, 3)
    bound0 = 1.0 / (IN_DIM ** 0.5)
    bound1 = 1.0 / (HID_DIM ** 0.5)
    w0 = jax.random.uniform(k0, (IN_DIM, HID_DIM), jnp.float32, -bound0, bound0)
    b0 = jax.random.uniform(k1, (1, HID_DIM), jnp.float32, -bound0, bound0)
    w1 = jax.random.uniform(k2, (HID_DIM, OUT_DIM), jnp.float32, -bound1, bound1)
    return w0, b0, w1


if __name__ == "__main__":
    key = jax.random.PRNGKey(0)
    kx, kp = jax.random.split(key)
    B = 8
    x = jax.random.normal(kx, (B, IN_DIM), dtype=jnp.float32)
    w0, b0, w1 = init_params(kp)
    params = prepare_params(w0, b0, w1)

    y = model_relu_forward(x, params)
    jax.block_until_ready(y)
    assert y.shape == (B, OUT_DIM)

    # bf16-consistent reference (same casts / f32 accumulation / bf16 output rounding).
    def ref(xv, lo=-jnp.inf, hi=jnp.inf, node=None):
        h = jnp.dot(xv.astype(jnp.bfloat16), w0.astype(jnp.bfloat16),
                    preferred_element_type=jnp.float32) + b0
        h = jnp.maximum(h, 0.0)
        if node is None:
            h = jnp.clip(h, lo, hi)
        else:
            h = h.at[:, node].set(jnp.clip(h[:, node], lo, hi))
        yv = jnp.dot(h.astype(jnp.bfloat16), w1.astype(jnp.bfloat16),
                     preferred_element_type=jnp.float32)
        return yv.astype(jnp.bfloat16).astype(jnp.float32)

    assert jnp.allclose(y, ref(x), atol=1e-2, rtol=1e-2)

    # Full-f32 reference: bf16 quantization error stays small.
    y_f32 = jnp.maximum(x @ w0 + b0, 0.0) @ w1
    assert jnp.allclose(y, y_f32, atol=5e-2, rtol=5e-2)

    # Ragged batch (exercises partial last block) + finite whole-layer perturbation.
    x13 = jax.random.normal(jax.random.PRNGKey(1), (13, IN_DIM), dtype=jnp.float32)
    y13 = model_relu_forward(x13, params, min_val=0.05, max_val=0.4)
    jax.block_until_ready(y13)
    assert y13.shape == (13, OUT_DIM)
    assert jnp.allclose(y13, ref(x13, 0.05, 0.4), atol=1e-2, rtol=1e-2)

    # Per-node perturbation (clamp only hidden unit 7).
    y_node = model_relu_forward(x13, params, min_val=0.0, max_val=0.1, node_idx=7)
    jax.block_until_ready(y_node)
    assert jnp.allclose(y_node, ref(x13, 0.0, 0.1, node=7), atol=1e-2, rtol=1e-2)

    print("KERNEL_OK")
</pallas_src>

<mosaic_0001>
module attributes {stable_mosaic.version = 11 : i64} {
  func.func @mlp_relu_kernel(%arg0: i32, %arg1: memref<2xf32, #tpu.memory_space<smem>>, %arg2: memref<1xi32, #tpu.memory_space<smem>>, %arg3: memref<16x784xf32, #tpu.memory_space<vmem>>, %arg4: memref<784x128xbf16, #tpu.memory_space<vmem>>, %arg5: memref<1x128xf32, #tpu.memory_space<vmem>>, %arg6: memref<128x128xbf16, #tpu.memory_space<vmem>>, %arg7: memref<16x128xbf16, #tpu.memory_space<vmem>>) attributes {dimension_semantics = [#tpu.dimension_semantics<parallel>], iteration_bounds = array<i64: 1>, scalar_prefetch = 0 : i64, scratch_operands = 0 : i64, tpu.core_type = #tpu.core_type<tc>, window_params = [{transform_indices = @transform_0, window_bounds = array<i64: 2>}, {transform_indices = @transform_1, window_bounds = array<i64: 1>}, {transform_indices = @transform_2, window_bounds = array<i64: 16, 784>}, {pipeline_mode = #tpu.pipeline_mode<synchronous>, transform_indices = @transform_3, window_bounds = array<i64: 784, 128>}, {pipeline_mode = #tpu.pipeline_mode<synchronous>, transform_indices = @transform_4, window_bounds = array<i64: 1, 128>}, {pipeline_mode = #tpu.pipeline_mode<synchronous>, transform_indices = @transform_5, window_bounds = array<i64: 128, 128>}, {transform_indices = @transform_6, window_bounds = array<i64: 16, 128>}]} {
    %c0 = arith.constant 0 : index
    %c0_0 = arith.constant 0 : index
    %0 = vector.load %arg3[%c0, %c0_0] : memref<16x784xf32, #tpu.memory_space<vmem>>, vector<16x784xf32>
    %1 = arith.truncf %0 : vector<16x784xf32> to vector<16x784xbf16>
    %c0_1 = arith.constant 0 : index
    %c0_2 = arith.constant 0 : index
    %2 = vector.load %arg4[%c0_1, %c0_2] : memref<784x128xbf16, #tpu.memory_space<vmem>>, vector<784x128xbf16>
    %cst = arith.constant dense<0.000000e+00> : vector<16x128xf32>
    %3 = tpu.matmul %1, %2, %cst {dimension_numbers = #tpu.dot_dimension_numbers<[1], [0], [0], [1], [0, 0, 1, 1], [], []>} : vector<16x784xbf16>, vector<784x128xbf16>, vector<16x128xf32> -> vector<16x128xf32>
    %c0_3 = arith.constant 0 : index
    %c0_4 = arith.constant 0 : index
    %4 = vector.load %arg5[%c0_3, %c0_4] : memref<1x128xf32, #tpu.memory_space<vmem>>, vector<1x128xf32>
    %5 = vector.broadcast %4 : vector<1x128xf32> to vector<16x128xf32>
    %6 = arith.addf %3, %5 : vector<16x128xf32>
    %cst_5 = arith.constant 0.000000e+00 : f32
    %7 = vector.broadcast %cst_5 : f32 to vector<16x128xf32>
    %8 = arith.maximumf %6, %7 : vector<16x128xf32>
    %c0_6 = arith.constant 0 : index
    %9 = memref.load %arg1[%c0_6] : memref<2xf32, #tpu.memory_space<smem>>
    %c1 = arith.constant 1 : index
    %10 = memref.load %arg1[%c1] : memref<2xf32, #tpu.memory_space<smem>>
    %11 = vector.broadcast %9 : f32 to vector<16x128xf32>
    %12 = arith.maximumf %11, %8 : vector<16x128xf32>
    %13 = vector.broadcast %10 : f32 to vector<16x128xf32>
    %14 = arith.minimumf %13, %12 : vector<16x128xf32>
    %c0_7 = arith.constant 0 : index
    %15 = memref.load %arg2[%c0_7] : memref<1xi32, #tpu.memory_space<smem>>
    %16 = tpu.iota {dimensions = array<i32: 1>} : vector<16x128xi32>
    %c0_i32 = arith.constant 0 : i32
    %17 = arith.cmpi slt, %15, %c0_i32 : i32
    %18 = vector.broadcast %15 : i32 to vector<16x128xi32>
    %19 = arith.cmpi eq, %16, %18 : vector<16x128xi32>
    %20 = vector.broadcast %17 : i1 to vector<16x128xi1>
    %21 = arith.ori %20, %19 : vector<16x128xi1>
    %22 = arith.select %21, %14, %8 : vector<16x128xi1>, vector<16x128xf32>
    %23 = arith.truncf %22 : vector<16x128xf32> to vector<16x128xbf16>
    %c0_8 = arith.constant 0 : index
    %c0_9 = arith.constant 0 : index
    %24 = vector.load %arg6[%c0_8, %c0_9] : memref<128x128xbf16, #tpu.memory_space<vmem>>, vector<128x128xbf16>
    %cst_10 = arith.constant dense<0.000000e+00> : vector<16x128xf32>
    %25 = tpu.matmul %23, %24, %cst_10 {dimension_numbers = #tpu.dot_dimension_numbers<[1], [0], [0], [1], [0, 0, 1, 1], [], []>} : vector<16x128xbf16>, vector<128x128xbf16>, vector<16x128xf32> -> vector<16x128xf32>
    %26 = arith.truncf %25 : vector<16x128xf32> to vector<16x128xbf16>
    %c0_11 = arith.constant 0 : index
    %c0_12 = arith.constant 0 : index
    %27 = vector.load %arg7[%c0_11, %c0_12] : memref<16x128xbf16, #tpu.memory_space<vmem>>, vector<16x128xbf16>
    tpu.vector_store %arg7[%c0_11, %c0_12], %26 {strides = array<i32>} : memref<16x128xbf16, #tpu.memory_space<vmem>>, vector<16x128xbf16>,
    return
  }
  func.func @transform_0(%arg0: i32) -> i32 {
    %c0_i32 = arith.constant 0 : i32
    %c0_i32_0 = arith.constant 0 : i32
    return %c0_i32 : i32
  }
  func.func @transform_1(%arg0: i32) -> i32 {
    %c0_i32 = arith.constant 0 : i32
    %c0_i32_0 = arith.constant 0 : i32
    return %c0_i32 : i32
  }
  func.func @transform_2(%arg0: i32) -> (i32, i32) {
    %c0_i32 = arith.constant 0 : i32
    %c0_i32_0 = arith.constant 0 : i32
    return %arg0, %c0_i32 : i32, i32
  }
  func.func @transform_3(%arg0: i32) -> (i32, i32) {
    %c0_i32 = arith.constant 0 : i32
    %c0_i32_0 = arith.constant 0 : i32
    %c0_i32_1 = arith.constant 0 : i32
    return %c0_i32, %c0_i32_0 : i32, i32
  }
  func.func @transform_4(%arg0: i32) -> (i32, i32) {
    %c0_i32 = arith.constant 0 : i32
    %c0_i32_0 = arith.constant 0 : i32
    %c0_i32_1 = arith.constant 0 : i32
    return %c0_i32, %c0_i32_0 : i32, i32
  }
  func.func @transform_5(%arg0: i32) -> (i32, i32) {
    %c0_i32 = arith.constant 0 : i32
    %c0_i32_0 = arith.constant 0 : i32
    %c0_i32_1 = arith.constant 0 : i32
    return %c0_i32, %c0_i32_0 : i32, i32
  }
  func.func @transform_6(%arg0: i32) -> (i32, i32) {
    %c0_i32 = arith.constant 0 : i32
    %c0_i32_0 = arith.constant 0 : i32
    return %arg0, %c0_i32 : i32, i32
  }
}

</mosaic_0001>

<llo_original>
// kernel: tpu_custom_call.1
$region0: #{tpu_custom_call.1}
  #allocation0 [shape = 'u32[]', space=smem, size = 0x4, offset = 0x4, fixed_abs, tag = 'smem constant byte address 0x4 - core index']
  #allocation1 [shape = 'u32[144,128]{1,0:T(1,128)}', space=vmem, size = 0x12000, scoped, tag = 'internal scratch']
  #allocation2 [shape = 's32[1]{0:T(128)S(6)}', space=smem, size = 0x200, scoped, tag = 'scoped memory for tpu_custom_call.1']
  %s0 = inlined_call_operand.vmem [shape: f32[2], index: 0, kind: input, shape index: {}]
  %s1 = inlined_call_operand.<no memory space> [shape: s32[1], index: 1, kind: input, shape index: {}]
  %s2 = inlined_call_operand.hbm [shape: f32[8,784], index: 2, kind: input, shape index: {}]
  %s3 = inlined_call_operand.hbm [shape: bf16[784,128], index: 3, kind: input, shape index: {}]
  %s4 = inlined_call_operand.vmem [shape: f32[1,128], index: 4, kind: input, shape index: {}]
  %s5 = inlined_call_operand.hbm [shape: bf16[128,128], index: 5, kind: input, shape index: {}]
  %s6 = inlined_call_operand.hbm [shape: bf16[8,128], index: 6, kind: output, shape index: {}]
  %s7 = sld [smem:[#allocation0]]
  $region50: #{tpu_custom_call.1} parent=0
    _
  %s9 = ssub.s32 1, %s7
  %s10 = scalar_select 0, %s9, %s7
  %11 = sst [smem:[#allocation2]] %s1
  $region1: #{tpu_custom_call.1} parent=0
    #allocation3 [shape = 'u8[512]{0}', space=smem, size = 0x200, scoped, tag = 'input window, operand 0, single buffered']
    #allocation4 [shape = 's32[1]{0}', space=sflag, size = 0x4, scoped, tag = 'scoped memory for tpu_custom_call.1']
    #allocation5 [shape = 's32[1]{0}', space=sflag, size = 0x4, scoped, tag = 'scoped memory for tpu_custom_call.1']
    #allocation6 [shape = 's32[1]{0}', space=sflag, size = 0x4, scoped, tag = 'scoped memory for tpu_custom_call.1']
    #allocation7 [shape = 'u8[57344]{0}', space=vmem, size = 0xe000, scoped, tag = 'input window, operand 2, single buffered']
    #allocation8 [shape = 'u8[200704]{0}', space=vmem, size = 0x31000, scoped, tag = 'input window, operand 3, single buffered']
    #allocation9 [shape = 's32[1]{0}', space=sflag, size = 0x4, scoped, tag = 'scoped memory for tpu_custom_call.1']
    #allocation10 [shape = 'u8[32768]{0}', space=vmem, size = 0x8000, scoped, tag = 'input window, operand 5, single buffered']
    #allocation11 [shape = 'u8[4096]{0}', space=vmem, size = 0x1000, scoped, tag = 'output window, operand 0, single buffered']
    %12 = vsyncpa [#allocation6], 0
    %13 = vsyncpa [#allocation4], 0
    %14 = vsyncpa [#allocation9], 0
    %15 = vsyncpa [#allocation5], 0
    // Predicated region
    $region2: #{tpu_custom_call.1} parent=1 // pred_check
      _
    $region3: #{tpu_custom_call.1} parent=1 // pred_check_branch
      %17 = sbr.rel (0) target = $region5
    $region4: #{tpu_custom_call.1} parent=1 // pred_region
      %s19 = ssub.s32 16, 16
      %20 = vsyncadd [#allocation6], %s19
      %s22 = sshll.u32 %s0, 4
      %s23 = int_to_ptr.vmem [resolvable:$true] %s22
      %25 = dma.vmem_to_smem %s23, 16, [#allocation3], [#allocation6]
    $region5: #{tpu_custom_call.1} parent=1 // pred_fallthru
      _
    // Predicated region
    $region6: #{tpu_custom_call.1} parent=1 // pred_check
      _
    $region7: #{tpu_custom_call.1} parent=1 // pred_check_branch
      %27 = sbr.rel (0) target = $region9
    $region8: #{tpu_custom_call.1} parent=1 // pred_region
      _
    $region9: #{tpu_custom_call.1} parent=1 // pred_fallthru
      _
    // Predicated region
    $region10: #{tpu_custom_call.1} parent=1 // pred_check
      _
    $region11: #{tpu_custom_call.1} parent=1 // pred_check_branch
      %29 = sbr.rel (0) target = $region13
    $region12: #{tpu_custom_call.1} parent=1 // pred_region
      %s31 = ssub.s32 1792, 896
      %32 = vsyncadd [#allocation4], %s31
      %s33 = sshll.u32 [#allocation7], 4
      %s34 = int_to_ptr.vmem [resolvable:$true] %s33
      %39 = dma.hbm_to_vmem [thread:$0]  %s2, 896, %s34, [#allocation4], 896, 896, 56
    $region13: #{tpu_custom_call.1} parent=1 // pred_fallthru
      _
    // Predicated region
    $region14: #{tpu_custom_call.1} parent=1 // pred_check
      _
    $region15: #{tpu_custom_call.1} parent=1 // pred_check_branch
      %41 = sbr.rel (0) target = $region17
    $region16: #{tpu_custom_call.1} parent=1 // pred_region
      %s43 = ssub.s32 6272, 6272
      %44 = vsyncadd [#allocation9], %s43
      %s45 = sshll.u32 [#allocation8], 4
      %s46 = int_to_ptr.vmem [resolvable:$true] %s45
      %51 = dma.hbm_to_vmem [thread:$0]  %s3, 6272, %s46, [#allocation9], 64, 64, 4
    $region17: #{tpu_custom_call.1} parent=1 // pred_fallthru
      _
    // Predicated region
    $region18: #{tpu_custom_call.1} parent=1 // pred_check
      _
    $region19: #{tpu_custom_call.1} parent=1 // pred_check_branch
      %53 = sbr.rel (0) target = $region21
    $region20: #{tpu_custom_call.1} parent=1 // pred_region
      _
    $region21: #{tpu_custom_call.1} parent=1 // pred_fallthru
      _
    // Predicated region
    $region22: #{tpu_custom_call.1} parent=1 // pred_check
      _
    $region23: #{tpu_custom_call.1} parent=1 // pred_check_branch
      %55 = sbr.rel (0) target = $region25
    $region24: #{tpu_custom_call.1} parent=1 // pred_region
      %s57 = ssub.s32 1024, 1024
      %58 = vsyncadd [#allocation9], %s57
      %s59 = sshll.u32 [#allocation10], 4
      %s60 = int_to_ptr.vmem [resolvable:$true] %s59
      %65 = dma.hbm_to_vmem [thread:$0]  %s5, 1024, %s60, [#allocation9], 64, 64, 4
    $region25: #{tpu_custom_call.1} parent=1 // pred_fallthru
      _
    // Predicated region
    $region26: #{tpu_custom_call.1} parent=1 // pred_check
      _
    $region27: #{tpu_custom_call.1} parent=1 // pred_check_branch
      %67 = sbr.rel (0) target = $region29
    $region28: #{tpu_custom_call.1} parent=1 // pred_region
      %68 = dma.done [#allocation6], 16
    $region29: #{tpu_custom_call.1} parent=1 // pred_fallthru
      _
    // Predicated region
    $region30: #{tpu_custom_call.1} parent=1 // pred_check
      _
    $region31: #{tpu_custom_call.1} parent=1 // pred_check_branch
      %70 = sbr.rel (0) target = $region33
    $region32: #{tpu_custom_call.1} parent=1 // pred_region
      %71 = dma.done [#allocation4], 1792
    $region33: #{tpu_custom_call.1} parent=1 // pred_fallthru
      _
    // Predicated region
    $region34: #{tpu_custom_call.1} parent=1 // pred_check
      _
    $region35: #{tpu_custom_call.1} parent=1 // pred_check_branch
      %73 = sbr.rel (0) target = $region37
    $region36: #{tpu_custom_call.1} parent=1 // pred_region
      %74 = dma.done [#allocation9], 6272
    $region37: #{tpu_custom_call.1} parent=1 // pred_fallthru
      _
    // Predicated region
    $region38: #{tpu_custom_call.1} parent=1 // pred_check
      _
    $region39: #{tpu_custom_call.1} parent=1 // pred_check_branch
      %76 = sbr.rel (0) target = $region41
    $region40: #{tpu_custom_call.1} parent=1 // pred_region
      %77 = dma.done [#allocation9], 1024
    $region41: #{tpu_custom_call.1} parent=1 // pred_fallthru
      _
    %78 = sfence
    %v80 = vld [vmem:[#allocation7] sm:$0xff]
    %v81 = vld [vmem:[#allocation7 + $0x8] sm:$0xff]
    %v82 = vld [vmem:[#allocation7 + $0x10] sm:$0xff]
    %v83 = vld [vmem:[#allocation7 + $0x18] sm:$0xff]
    %v84 = vld [vmem:[#allocation7 + $0x20] sm:$0xff]
    %v85 = vld [vmem:[#allocation7 + $0x28] sm:$0xff]
    %v86 = vld [vmem:[#allocation7 + $0x30] sm:$0xff]
    %v87 = vld [vmem:[#allocation7 + $0x38] sm:$0xff]
    %v88 = vld [vmem:[#allocation7 + $0x40] sm:$0xff]
    %v89 = vld [vmem:[#allocation7 + $0x48] sm:$0xff]
    %v90 = vld [vmem:[#allocation7 + $0x50] sm:$0xff]
    %v91 = vld [vmem:[#allocation7 + $0x58] sm:$0xff]
    %v92 = vld [vmem:[#allocation7 + $0x60] sm:$0xff]
    %v93 = vld [vmem:[#allocation7 + $0x68] sm:$0xff]
    %v94 = vpack.c.bf16 %v87, %v80
    %v95 = vpack.c.bf16 %v88, %v81
    %v96 = vpack.c.bf16 %v89, %v82
    %v97 = vpack.c.bf16 %v90, %v83
    %v98 = vpack.c.bf16 %v91, %v84
    %v99 = vpack.c.bf16 %v92, %v85
    %v100 = vpack.c.bf16 %v93, %v86
    %v101 = vld [vmem:[#allocation8] sm:$0xf]
    %v102 = vld [vmem:[#allocation8 + $0x4] sm:$0xf]
    %v103 = vld [vmem:[#allocation8 + $0x8] sm:$0xf]
    %v104 = vld [vmem:[#allocation8 + $0xc] sm:$0xf]
    %v105 = vld [vmem:[#allocation8 + $0x10] sm:$0xf]
    %v106 = vld [vmem:[#allocation8 + $0x14] sm:$0xf]
    %v107 = vld [vmem:[#allocation8 + $0x18] sm:$0xf]
    %v108 = vld [vmem:[#allocation8 + $0x1c] sm:$0xf]
    %v109 = vld [vmem:[#allocation8 + $0x20] sm:$0xf]
    %v110 = vld [vmem:[#allocation8 + $0x24] sm:$0xf]
    %v111 = vld [vmem:[#allocation8 + $0x28] sm:$0xf]
    %v112 = vld [vmem:[#allocation8 + $0x2c] sm:$0xf]
    %v113 = vld [vmem:[#allocation8 + $0x30] sm:$0xf]
    %v114 = vld [vmem:[#allocation8 + $0x34] sm:$0xf]
    %v115 = vld [vmem:[#allocation8 + $0x38] sm:$0xf]
    %v116 = vld [vmem:[#allocation8 + $0x3c] sm:$0xf]
    %v117 = vld [vmem:[#allocation8 + $0x40] sm:$0xf]
    %v118 = vld [vmem:[#allocation8 + $0x44] sm:$0xf]
    %v119 = vld [vmem:[#allocation8 + $0x48] sm:$0xf]
    %v120 = vld [vmem:[#allocation8 + $0x4c] sm:$0xf]
    %v121 = vld [vmem:[#allocation8 + $0x50] sm:$0xf]
    %v122 = vld [vmem:[#allocation8 + $0x54] sm:$0xf]
    %v123 = vld [vmem:[#allocation8 + $0x58] sm:$0xf]
    %v124 = vld [vmem:[#allocation8 + $0x5c] sm:$0xf]
    %v125 = vld [vmem:[#allocation8 + $0x60] sm:$0xf]
    %v126 = vld [vmem:[#allocation8 + $0x64] sm:$0xf]
    %v127 = vld [vmem:[#allocation8 + $0x68] sm:$0xf]
    %v128 = vld [vmem:[#allocation8 + $0x6c] sm:$0xf]
    %v129 = vld [vmem:[#allocation8 + $0x70] sm:$0xf]
    %v130 = vld [vmem:[#allocation8 + $0x74] sm:$0xf]
    %v131 = vld [vmem:[#allocation8 + $0x78] sm:$0xf]
    %v132 = vld [vmem:[#allocation8 + $0x7c] sm:$0xf]
    %v133 = vld [vmem:[#allocation8 + $0x80] sm:$0xf]
    %v134 = vld [vmem:[#allocation8 + $0x84] sm:$0xf]
    %v135 = vld [vmem:[#allocation8 + $0x88] sm:$0xf]
    %v136 = vld [vmem:[#allocation8 + $0x8c] sm:$0xf]
    %v137 = vld [vmem:[#allocation8 + $0x90] sm:$0xf]
    %v138 = vld [vmem:[#allocation8 + $0x94] sm:$0xf]
    %v139 = vld [vmem:[#allocation8 + $0x98] sm:$0xf]
    %v140 = vld [vmem:[#allocation8 + $0x9c] sm:$0xf]
    %v141 = vld [vmem:[#allocation8 + $0xa0] sm:$0xf]
    %v142 = vld [vmem:[#allocation8 + $0xa4] sm:$0xf]
    %v143 = vld [vmem:[#allocation8 + $0xa8] sm:$0xf]
    %v144 = vld [vmem:[#allocation8 + $0xac] sm:$0xf]
    %v145 = vld [vmem:[#allocation8 + $0xb0] sm:$0xf]
    %v146 = vld [vmem:[#allocation8 + $0xb4] sm:$0xf]
    %v147 = vld [vmem:[#allocation8 + $0xb8] sm:$0xf]
    %v148 = vld [vmem:[#allocation8 + $0xbc] sm:$0xf]
    %v149 = vld [vmem:[#allocation8 + $0xc0] sm:$0xf]
    %v150 = vld [vmem:[#allocation8 + $0xc4] sm:$0xf]
    %v151 = vld [vmem:[#allocation8 + $0xc8] sm:$0xf]
    %v152 = vld [vmem:[#allocation8 + $0xcc] sm:$0xf]
    %v153 = vld [vmem:[#allocation8 + $0xd0] sm:$0xf]
    %v154 = vld [vmem:[#allocation8 + $0xd4] sm:$0xf]
    %v155 = vld [vmem:[#allocation8 + $0xd8] sm:$0xf]
    %v156 = vld [vmem:[#allocation8 + $0xdc] sm:$0xf]
    %v157 = vld [vmem:[#allocation8 + $0xe0] sm:$0xf]
    %v158 = vld [vmem:[#allocation8 + $0xe4] sm:$0xf]
    %v159 = vld [vmem:[#allocation8 + $0xe8] sm:$0xf]
    %v160 = vld [vmem:[#allocation8 + $0xec] sm:$0xf]
    %v161 = vld [vmem:[#allocation8 + $0xf0] sm:$0xf]
    %v162 = vld [vmem:[#allocation8 + $0xf4] sm:$0xf]
    %v163 = vld [vmem:[#allocation8 + $0xf8] sm:$0xf]
    %v164 = vld [vmem:[#allocation8 + $0xfc] sm:$0xf]
    %v165 = vld [vmem:[#allocation8 + $0x100] sm:$0xf]
    %v166 = vld [vmem:[#allocation8 + $0x104] sm:$0xf]
    %v167 = vld [vmem:[#allocation8 + $0x108] sm:$0xf]
    %v168 = vld [vmem:[#allocation8 + $0x10c] sm:$0xf]
    %v169 = vld [vmem:[#allocation8 + $0x110] sm:$0xf]
    %v170 = vld [vmem:[#allocation8 + $0x114] sm:$0xf]
    %v171 = vld [vmem:[#allocation8 + $0x118] sm:$0xf]
    %v172 = vld [vmem:[#allocation8 + $0x11c] sm:$0xf]
    %v173 = vld [vmem:[#allocation8 + $0x120] sm:$0xf]
    %v174 = vld [vmem:[#allocation8 + $0x124] sm:$0xf]
    %v175 = vld [vmem:[#allocation8 + $0x128] sm:$0xf]
    %v176 = vld [vmem:[#allocation8 + $0x12c] sm:$0xf]
    %v177 = vld [vmem:[#allocation8 + $0x130] sm:$0xf]
    %v178 = vld [vmem:[#allocation8 + $0x134] sm:$0xf]
    %v179 = vld [vmem:[#allocation8 + $0x138] sm:$0xf]
    %v180 = vld [vmem:[#allocation8 + $0x13c] sm:$0xf]
    %v181 = vld [vmem:[#allocation8 + $0x140] sm:$0xf]
    %v182 = vld [vmem:[#allocation8 + $0x144] sm:$0xf]
    %v183 = vld [vmem:[#allocation8 + $0x148] sm:$0xf]
    %v184 = vld [vmem:[#allocation8 + $0x14c] sm:$0xf]
    %v185 = vld [vmem:[#allocation8 + $0x150] sm:$0xf]
    %v186 = vld [vmem:[#allocation8 + $0x154] sm:$0xf]
    %v187 = vld [vmem:[#allocation8 + $0x158] sm:$0xf]
    %v188 = vld [vmem:[#allocation8 + $0x15c] sm:$0xf]
    %v189 = vld [vmem:[#allocation8 + $0x160] sm:$0xf]
    %v190 = vld [vmem:[#allocation8 + $0x164] sm:$0xf]
    %v191 = vld [vmem:[#allocation8 + $0x168] sm:$0xf]
    %v192 = vld [vmem:[#allocation8 + $0x16c] sm:$0xf]
    %v193 = vld [vmem:[#allocation8 + $0x170] sm:$0xf]
    %v194 = vld [vmem:[#allocation8 + $0x174] sm:$0xf]
    %v195 = vld [vmem:[#allocation8 + $0x178] sm:$0xf]
    %v196 = vld [vmem:[#allocation8 + $0x17c] sm:$0xf]
    %v197 = vld [vmem:[#allocation8 + $0x180] sm:$0xf]
    %v198 = vld [vmem:[#allocation8 + $0x184] sm:$0xf]
    %v199 = vld [vmem:[%s4] sm:$0x1]
    %v201 = vlaneseq
    %v202 = vshrl.u32 %v201, 7
    %v203 = vsub.s32 0, %v202
    %v204 = vrot.slane %v199, %v203
    %v304 = vunpack.c.l.b16 %v101
    %v305 = vunpack.c.l.b16 %v102
    %v306 = vunpack.c.l.b16 %v103
    %v307 = vunpack.c.l.b16 %v104
    %v308 = vunpack.c.l.b16 %v105
    %v309 = vunpack.c.l.b16 %v106
    %v310 = vunpack.c.l.b16 %v107
    %v311 = vunpack.c.l.b16 %v108
    %v312 = vunpack.c.l.b16 %v109
    %v313 = vunpack.c.l.b16 %v110
    %v314 = vunpack.c.l.b16 %v111
    %v315 = vunpack.c.l.b16 %v112
    %v316 = vunpack.c.l.b16 %v113
    %v317 = vunpack.c.l.b16 %v114
    %v318 = vunpack.c.l.b16 %v115
    %v319 = vunpack.c.l.b16 %v116
    %v320 = vunpack.c.l.b16 %v117
    %v321 = vunpack.c.l.b16 %v118
    %v322 = vunpack.c.l.b16 %v119
    %v323 = vunpack.c.l.b16 %v120
    %v324 = vunpack.c.l.b16 %v121
    %v325 = vunpack.c.l.b16 %v122
    %v326 = vunpack.c.l.b16 %v123
    %v327 = vunpack.c.l.b16 %v124
    %v328 = vunpack.c.l.b16 %v125
    %v329 = vunpack.c.l.b16 %v126
    %v330 = vunpack.c.l.b16 %v127
    %v331 = vunpack.c.l.b16 %v128
    %v332 = vunpack.c.l.b16 %v129
    %v333 = vunpack.c.l.b16 %v130
    %v334 = vunpack.c.l.b16 %v131
    %v335 = vunpack.c.l.b16 %v132
    %v336 = vunpack.c.l.b16 %v133
    %v337 = vunpack.c.l.b16 %v134
    %v338 = vunpack.c.l.b16 %v135
    %v339 = vunpack.c.l.b16 %v136
    %v340 = vunpack.c.l.b16 %v137
    %v341 = vunpack.c.l.b16 %v138
    %v342 = vunpack.c.l.b16 %v139
    %v343 = vunpack.c.l.b16 %v140
    %v344 = vunpack.c.l.b16 %v141
    %v345 = vunpack.c.l.b16 %v142
    %v346 = vunpack.c.l.b16 %v143
    %v347 = vunpack.c.l.b16 %v144
    %v348 = vunpack.c.l.b16 %v145
    %v349 = vunpack.c.l.b16 %v146
    %v350 = vunpack.c.l.b16 %v147
    %v351 = vunpack.c.l.b16 %v148
    %v352 = vunpack.c.l.b16 %v149
    %v353 = vunpack.c.l.b16 %v150
    %v354 = vunpack.c.l.b16 %v151
    %v355 = vunpack.c.l.b16 %v152
    %v356 = vunpack.c.l.b16 %v153
    %v357 = vunpack.c.l.b16 %v154
    %v358 = vunpack.c.l.b16 %v155
    %v359 = vunpack.c.l.b16 %v156
    %v360 = vunpack.c.l.b16 %v157
    %v361 = vunpack.c.l.b16 %v158
    %v362 = vunpack.c.l.b16 %v159
    %v363 = vunpack.c.l.b16 %v160
    %v364 = vunpack.c.l.b16 %v161
    %v365 = vunpack.c.l.b16 %v162
    %v366 = vunpack.c.l.b16 %v163
    %v367 = vunpack.c.l.b16 %v164
    %v368 = vunpack.c.l.b16 %v165
    %v369 = vunpack.c.l.b16 %v166
    %v370 = vunpack.c.l.b16 %v167
    %v371 = vunpack.c.l.b16 %v168
    %v372 = vunpack.c.l.b16 %v169
    %v373 = vunpack.c.l.b16 %v170
    %v374 = vunpack.c.l.b16 %v171
    %v375 = vunpack.c.l.b16 %v172
    %v376 = vunpack.c.l.b16 %v173
    %v377 = vunpack.c.l.b16 %v174
    %v378 = vunpack.c.l.b16 %v175
    %v379 = vunpack.c.l.b16 %v176
    %v380 = vunpack.c.l.b16 %v177
    %v381 = vunpack.c.l.b16 %v178
    %v382 = vunpack.c.l.b16 %v179
    %v383 = vunpack.c.l.b16 %v180
    %v384 = vunpack.c.l.b16 %v181
    %v385 = vunpack.c.l.b16 %v182
    %v386 = vunpack.c.l.b16 %v183
    %v387 = vunpack.c.l.b16 %v184
    %v388 = vunpack.c.l.b16 %v185
    %v389 = vunpack.c.l.b16 %v186
    %v390 = vunpack.c.l.b16 %v187
    %v391 = vunpack.c.l.b16 %v188
    %v392 = vunpack.c.l.b16 %v189
    %v393 = vunpack.c.l.b16 %v190
    %v394 = vunpack.c.l.b16 %v191
    %v395 = vunpack.c.l.b16 %v192
    %v396 = vunpack.c.l.b16 %v193
    %v397 = vunpack.c.l.b16 %v194
    %v398 = vunpack.c.l.b16 %v195
    %v399 = vunpack.c.l.b16 %v196
    %v400 = vunpack.c.l.b16 %v197
    %v401 = vunpack.c.l.b16 %v198
    %v402 = vpack.c.b16 %v305, %v304
    %v403 = vpack.c.b16 %v307, %v306
    %v404 = vpack.c.b16 %v309, %v308
    %v405 = vpack.c.b16 %v311, %v310
    %v406 = vpack.c.b16 %v313, %v312
    %v407 = vpack.c.b16 %v315, %v314
    %v408 = vpack.c.b16 %v317, %v316
    %v409 = vpack.c.b16 %v319, %v318
    %v410 = vpack.c.b16 %v321, %v320
    %v411 = vpack.c.b16 %v323, %v322
    %v412 = vpack.c.b16 %v325, %v324
    %v413 = vpack.c.b16 %v327, %v326
    %v414 = vpack.c.b16 %v329, %v328
    %v415 = vpack.c.b16 %v331, %v330
    %v416 = vpack.c.b16 %v333, %v332
    %v417 = vpack.c.b16 %v335, %v334
    %v418 = vpack.c.b16 %v337, %v336
    %v419 = vpack.c.b16 %v339, %v338
    %v420 = vpack.c.b16 %v341, %v340
    %v421 = vpack.c.b16 %v343, %v342
    %v422 = vpack.c.b16 %v345, %v344
    %v423 = vpack.c.b16 %v347, %v346
    %v424 = vpack.c.b16 %v349, %v348
    %v425 = vpack.c.b16 %v351, %v350
    %v426 = vpack.c.b16 %v353, %v352
    %v427 = vpack.c.b16 %v355, %v354
    %v428 = vpack.c.b16 %v357, %v356
    %v429 = vpack.c.b16 %v359, %v358
    %v430 = vpack.c.b16 %v361, %v360
    %v431 = vpack.c.b16 %v363, %v362
    %v432 = vpack.c.b16 %v365, %v364
    %v433 = vpack.c.b16 %v367, %v366
    %v434 = vpack.c.b16 %v369, %v368
    %v435 = vpack.c.b16 %v371, %v370
    %v436 = vpack.c.b16 %v373, %v372
    %v437 = vpack.c.b16 %v375, %v374
    %v438 = vpack.c.b16 %v377, %v376
    %v439 = vpack.c.b16 %v379, %v378
    %v440 = vpack.c.b16 %v381, %v380
    %v441 = vpack.c.b16 %v383, %v382
    %v442 = vpack.c.b16 %v385, %v384
    %v443 = vpack.c.b16 %v387, %v386
    %v444 = vpack.c.b16 %v389, %v388
    %v445 = vpack.c.b16 %v391, %v390
    %v446 = vpack.c.b16 %v393, %v392
    %v447 = vpack.c.b16 %v395, %v394
    %v448 = vpack.c.b16 %v397, %v396
    %v449 = vpack.c.b16 %v399, %v398
    %v450 = vpack.c.b16 %v401, %v400
    %vm500 = vcmask 130048
    %v502 = vsel %vm500, %v100, 0
    %504 = vmatprep.subr.bf16.mxu0 0
    %505 = vmatpush1.bf16.msra.mxu0 %v402
    %506 = vmatprep.subr.bf16.mxu0 0
    %507 = vmatpush1.bf16.msra.mxu0 %v403
    %508 = vmatprep.subr.bf16.mxu0 0
    %509 = vmatpush1.bf16.msra.mxu0 %v404
    %510 = vmatprep.subr.bf16.mxu0 0
    %511 = vmatpush1.bf16.msra.mxu0 %v405
    %512 = vmatprep.subr.bf16.mxu0 0
    %513 = vmatpush1.bf16.msra.mxu0 %v406
    %514 = vmatprep.subr.bf16.mxu0 0
    %515 = vmatpush1.bf16.msra.mxu0 %v407
    %516 = vmatprep.subr.bf16.mxu0 0
    %517 = vmatpush1.bf16.msra.mxu0 %v408
    %518 = vmatprep.subr.bf16.mxu0 0
    %519 = vmatpush1.bf16.msra.mxu0 %v409
    %520 = vmatprep.subr.bf16.mxu0 0
    %521 = vmatpush1.bf16.msra.mxu0 %v410
    %522 = vmatprep.subr.bf16.mxu0 0
    %523 = vmatpush1.bf16.msra.mxu0 %v411
    %524 = vmatprep.subr.bf16.mxu0 0
    %525 = vmatpush1.bf16.msra.mxu0 %v412
    %526 = vmatprep.subr.bf16.mxu0 0
    %527 = vmatpush1.bf16.msra.mxu0 %v413
    %528 = vmatprep.subr.bf16.mxu0 0
    %529 = vmatpush1.bf16.msra.mxu0 %v414
    %530 = vmatprep.subr.bf16.mxu0 0
    %531 = vmatpush1.bf16.msra.mxu0 %v415
    %532 = vmatprep.subr.bf16.mxu0 0
    %533 = vmatpush1.bf16.msra.mxu0 %v416
    %534 = vmatprep.subr.bf16.mxu0 0
    %535 = vmatpush1.bf16.msra.mxu0 %v417
    %536 = vmatprep.mubr.bf16.mxu0 %v95
    %537 = vmatmul.mubr.bf16.gmra.mrb[0].mxu0 %v94
    %v538 = vpop.f32.mrb[0].mxu0
    %v539 = vadd.f32 %v204, %v538
    %v540 = vpop.f32.mrb[0].mxu0
    %v541 = vpop.f32.mrb[0].mxu0
    %v542 = vadd.f32 %v204, %v541
    %v543 = vpop.f32.mrb[0].mxu0
    %544 = vdwg.mxu0
    %545 = vmatprep.subr.bf16.mxu0 0
    %546 = vmatpush1.bf16.msra.mxu0 %v418
    %547 = vmatprep.subr.bf16.mxu0 0
    %548 = vmatpush1.bf16.msra.mxu0 %v419
    %549 = vmatprep.subr.bf16.mxu0 0
    %550 = vmatpush1.bf16.msra.mxu0 %v420
    %551 = vmatprep.subr.bf16.mxu0 0
    %552 = vmatpush1.bf16.msra.mxu0 %v421
    %553 = vmatprep.subr.bf16.mxu0 0
    %554 = vmatpush1.bf16.msra.mxu0 %v422
    %555 = vmatprep.subr.bf16.mxu0 0
    %556 = vmatpush1.bf16.msra.mxu0 %v423
    %557 = vmatprep.subr.bf16.mxu0 0
    %558 = vmatpush1.bf16.msra.mxu0 %v424
    %559 = vmatprep.subr.bf16.mxu0 0
    %560 = vmatpush1.bf16.msra.mxu0 %v425
    %561 = vmatprep.subr.bf16.mxu0 0
    %562 = vmatpush1.bf16.msra.mxu0 %v426
    %563 = vmatprep.subr.bf16.mxu0 0
    %564 = vmatpush1.bf16.msra.mxu0 %v427
    %565 = vmatprep.subr.bf16.mxu0 0
    %566 = vmatpush1.bf16.msra.mxu0 %v428
    %567 = vmatprep.subr.bf16.mxu0 0
    %568 = vmatpush1.bf16.msra.mxu0 %v429
    %569 = vmatprep.subr.bf16.mxu0 0
    %570 = vmatpush1.bf16.msra.mxu0 %v430
    %571 = vmatprep.subr.bf16.mxu0 0
    %572 = vmatpush1.bf16.msra.mxu0 %v431
    %573 = vmatprep.subr.bf16.mxu0 0
    %574 = vmatpush1.bf16.msra.mxu0 %v432
    %575 = vmatprep.subr.bf16.mxu0 0
    %576 = vmatpush1.bf16.msra.mxu0 %v433
    %577 = vmatprep.mubr.bf16.mxu0 %v97
    %578 = vmatmul.mubr.bf16.gmra.mrb[0].mxu0 %v96
    %v579 = vpop.f32.mrb[0].mxu0
    %v580 = vadd.f32 %v539, %v579
    %v581 = vpop.f32.mrb[0].mxu0
    %v582 = vpop.f32.mrb[0].mxu0
    %v583 = vadd.f32 %v542, %v582
    %v584 = vpop.f32.mrb[0].mxu0
    %585 = vdwg.mxu0
    %586 = vmatprep.subr.bf16.mxu0 0
    %587 = vmatpush1.bf16.msra.mxu0 %v434
    %588 = vmatprep.subr.bf16.mxu0 0
    %589 = vmatpush1.bf16.msra.mxu0 %v435
    %590 = vmatprep.subr.bf16.mxu0 0
    %591 = vmatpush1.bf16.msra.mxu0 %v436
    %592 = vmatprep.subr.bf16.mxu0 0
    %593 = vmatpush1.bf16.msra.mxu0 %v437
    %594 = vmatprep.subr.bf16.mxu0 0
    %595 = vmatpush1.bf16.msra.mxu0 %v438
    %596 = vmatprep.subr.bf16.mxu0 0
    %597 = vmatpush1.bf16.msra.mxu0 %v439
    %598 = vmatprep.subr.bf16.mxu0 0
    %599 = vmatpush1.bf16.msra.mxu0 %v440
    %600 = vmatprep.subr.bf16.mxu0 0
    %601 = vmatpush1.bf16.msra.mxu0 %v441
    %602 = vmatprep.subr.bf16.mxu0 0
    %603 = vmatpush1.bf16.msra.mxu0 %v442
    %604 = vmatprep.subr.bf16.mxu0 0
    %605 = vmatpush1.bf16.msra.mxu0 %v443
    %606 = vmatprep.subr.bf16.mxu0 0
    %607 = vmatpush1.bf16.msra.mxu0 %v444
    %608 = vmatprep.subr.bf16.mxu0 0
    %609 = vmatpush1.bf16.msra.mxu0 %v445
    %610 = vmatprep.subr.bf16.mxu0 0
    %611 = vmatpush1.bf16.msra.mxu0 %v446
    %612 = vmatprep.subr.bf16.mxu0 0
    %613 = vmatpush1.bf16.msra.mxu0 %v447
    %614 = vmatprep.subr.bf16.mxu0 0
    %615 = vmatpush1.bf16.msra.mxu0 %v448
    %616 = vmatprep.subr.bf16.mxu0 0
    %617 = vmatpush1.bf16.msra.mxu0 %v449
    %618 = vmatprep.mubr.bf16.mxu0 %v99
    %619 = vmatmul.mubr.bf16.gmra.mrb[0].mxu0 %v98
    %v620 = vpop.f32.mrb[0].mxu0
    %v621 = vadd.f32 %v580, %v620
    %v622 = vpop.f32.mrb[0].mxu0
    %v623 = vpop.f32.mrb[0].mxu0
    %v624 = vadd.f32 %v583, %v623
    %v625 = vpop.f32.mrb[0].mxu0
    %626 = vdwg.mxu0
    %627 = vmatprep.subr.bf16.mxu0 0
    %628 = vmatpush1.bf16.msra.mxu0 %v450
    %629 = vmatprep.subr.bf16.mxu0 0
    %630 = vmatpush1.bf16.msra.mxu0 0
    %631 = vmatprep.subr.bf16.mxu0 0
    %632 = vmatpush1.bf16.msra.mxu0 0
    %633 = vmatprep.subr.bf16.mxu0 0
    %634 = vmatpush1.bf16.msra.mxu0 0
    %635 = vmatprep.subr.bf16.mxu0 0
    %636 = vmatpush1.bf16.msra.mxu0 0
    %637 = vmatprep.subr.bf16.mxu0 0
    %638 = vmatpush1.bf16.msra.mxu0 0
    %639 = vmatprep.subr.bf16.mxu0 0
    %640 = vmatpush1.bf16.msra.mxu0 0
    %641 = vmatprep.subr.bf16.mxu0 0
    %642 = vmatpush1.bf16.msra.mxu0 0
    %643 = vmatprep.subr.bf16.mxu0 0
    %644 = vmatpush1.bf16.msra.mxu0 0
    %645 = vmatprep.subr.bf16.mxu0 0
    %646 = vmatpush1.bf16.msra.mxu0 0
    %647 = vmatprep.subr.bf16.mxu0 0
    %648 = vmatpush1.bf16.msra.mxu0 0
    %649 = vmatprep.subr.bf16.mxu0 0
    %650 = vmatpush1.bf16.msra.mxu0 0
    %651 = vmatprep.subr.bf16.mxu0 0
    %652 = vmatpush1.bf16.msra.mxu0 0
    %653 = vmatprep.subr.bf16.mxu0 0
    %654 = vmatpush1.bf16.msra.mxu0 0
    %655 = vmatprep.subr.bf16.mxu0 0
    %656 = vmatpush1.bf16.msra.mxu0 0
    %657 = vmatprep.subr.bf16.mxu0 0
    %658 = vmatpush1.bf16.msra.mxu0 0
    %659 = vmatprep.mubr.bf16.mxu0 0
    %660 = vmatmul.mubr.bf16.gmra.mrb[0].mxu0 %v502
    %v661 = vpop.f32.mrb[0].mxu0
    %v662 = vadd.f32 %v621, %v661
    %v663 = vpop.f32.mrb[0].mxu0
    %v664 = vpop.f32.mrb[0].mxu0
    %v665 = vadd.f32 %v624, %v664
    %v666 = vpop.f32.mrb[0].mxu0
    %667 = vdwg.mxu0
    %v668 = vmax.f32 %v662, 0.0
    %v669 = vmax.f32 %v665, 0.0
    %s670 = sld [smem:[#allocation3]]
    %s671 = sld [smem:[#allocation3 + $0x1]]
    %v672 = vstv %s670
    %v673 = vmax.f32 %v672, %v668
    %v674 = vmax.f32 %v672, %v669
    %v675 = vstv %s671
    %v676 = vmin.f32 %v675, %v673
    %v677 = vmin.f32 %v675, %v674
    %s678 = sld [smem:[#allocation2]]
    %v679 = vlaneseq
    %v680 = vand.u32 %v679, 127
    %p681 = scmp.lt.s32.totalorder %s678, 0
    %v682 = vstv %s678
    %vm683 = vcmp.eq.s32.totalorder %v680, %v682
    %s684 = scalar_select %p681, 1, 0
    %v685 = vstv %s684
    %vm686 = vcmp.eq.s32.totalorder %v685, 1
    %vm687 = vmor %vm686, %vm683
    %v688 = vsel %vm687, %v676, %v668
    %v689 = vsel %vm687, %v677, %v669
    %v690 = vpack.c.bf16 %v689, %v688
    %v691 = vld [vmem:[#allocation10] sm:$0xf]
    %v692 = vld [vmem:[#allocation10 + $0x4] sm:$0xf]
    %v693 = vld [vmem:[#allocation10 + $0x8] sm:$0xf]
    %v694 = vld [vmem:[#allocation10 + $0xc] sm:$0xf]
    %v695 = vld [vmem:[#allocation10 + $0x10] sm:$0xf]
    %v696 = vld [vmem:[#allocation10 + $0x14] sm:$0xf]
    %v697 = vld [vmem:[#allocation10 + $0x18] sm:$0xf]
    %v698 = vld [vmem:[#allocation10 + $0x1c] sm:$0xf]
    %v699 = vld [vmem:[#allocation10 + $0x20] sm:$0xf]
    %v700 = vld [vmem:[#allocation10 + $0x24] sm:$0xf]
    %v701 = vld [vmem:[#allocation10 + $0x28] sm:$0xf]
    %v702 = vld [vmem:[#allocation10 + $0x2c] sm:$0xf]
    %v703 = vld [vmem:[#allocation10 + $0x30] sm:$0xf]
    %v704 = vld [vmem:[#allocation10 + $0x34] sm:$0xf]
    %v705 = vld [vmem:[#allocation10 + $0x38] sm:$0xf]
    %v706 = vld [vmem:[#allocation10 + $0x3c] sm:$0xf]
    %v723 = vunpack.c.l.b16 %v691
    %v724 = vunpack.c.l.b16 %v692
    %v725 = vunpack.c.l.b16 %v693
    %v726 = vunpack.c.l.b16 %v694
    %v727 = vunpack.c.l.b16 %v695
    %v728 = vunpack.c.l.b16 %v696
    %v729 = vunpack.c.l.b16 %v697
    %v730 = vunpack.c.l.b16 %v698
    %v731 = vunpack.c.l.b16 %v699
    %v732 = vunpack.c.l.b16 %v700
    %v733 = vunpack.c.l.b16 %v701
    %v734 = vunpack.c.l.b16 %v702
    %v735 = vunpack.c.l.b16 %v703
    %v736 = vunpack.c.l.b16 %v704
    %v737 = vunpack.c.l.b16 %v705
    %v738 = vunpack.c.l.b16 %v706
    %v739 = vpack.c.b16 %v724, %v723
    %v740 = vpack.c.b16 %v726, %v725
    %v741 = vpack.c.b16 %v728, %v727
    %v742 = vpack.c.b16 %v730, %v729
    %v743 = vpack.c.b16 %v732, %v731
    %v744 = vpack.c.b16 %v734, %v733
    %v745 = vpack.c.b16 %v736, %v735
    %v746 = vpack.c.b16 %v738, %v737
    %755 = vmatprep.subr.bf16.mxu0 0
    %756 = vmatpush1.bf16.msra.mxu0 %v739
    %757 = vmatprep.subr.bf16.mxu0 0
    %758 = vmatpush1.bf16.msra.mxu0 %v740
    %759 = vmatprep.subr.bf16.mxu0 0
    %760 = vmatpush1.bf16.msra.mxu0 %v741
    %761 = vmatprep.subr.bf16.mxu0 0
    %762 = vmatpush1.bf16.msra.mxu0 %v742
    %763 = vmatprep.subr.bf16.mxu0 0
    %764 = vmatpush1.bf16.msra.mxu0 %v743
    %765 = vmatprep.subr.bf16.mxu0 0
    %766 = vmatpush1.bf16.msra.mxu0 %v744
    %767 = vmatprep.subr.bf16.mxu0 0
    %768 = vmatpush1.bf16.msra.mxu0 %v745
    %769 = vmatprep.subr.bf16.mxu0 0
    %770 = vmatpush1.bf16.msra.mxu0 %v746
    %771 = vmatprep.subr.bf16.mxu0 0
    %772 = vmatpush1.bf16.msra.mxu0 0
    %773 = vmatprep.subr.bf16.mxu0 0
    %774 = vmatpush1.bf16.msra.mxu0 0
    %775 = vmatprep.subr.bf16.mxu0 0
    %776 = vmatpush1.bf16.msra.mxu0 0
    %777 = vmatprep.subr.bf16.mxu0 0
    %778 = vmatpush1.bf16.msra.mxu0 0
    %779 = vmatprep.subr.bf16.mxu0 0
    %780 = vmatpush1.bf16.msra.mxu0 0
    %781 = vmatprep.subr.bf16.mxu0 0
    %782 = vmatpush1.bf16.msra.mxu0 0
    %783 = vmatprep.subr.bf16.mxu0 0
    %784 = vmatpush1.bf16.msra.mxu0 0
    %785 = vmatprep.subr.bf16.mxu0 0
    %786 = vmatpush1.bf16.msra.mxu0 0
    %787 = vmatprep.mubr.bf16.mxu0 0
    %788 = vmatmul.mubr.bf16.gmra.mrb[0].mxu0 %v690
    %v789 = vpop.f32.mrb[0].mxu0
    %v790 = vadd.f32 0.0, %v789
    %v791 = vpop.f32.mrb[0].mxu0
    %v792 = vpop.f32.mrb[0].mxu0
    %v793 = vadd.f32 0.0, %v792
    %v794 = vpop.f32.mrb[0].mxu0
    %795 = vdwg.mxu0
    %v796 = vpack.c.bf16 %v793, %v790
    %v798 = vunpack.c.l.b16 %v796
    %v799 = vunpack.c.h.b16 %v796
    %v800 = vpack.c.b16 %v798, %v798
    %v801 = vpack.c.b16 %v799, %v799
    %804 = vst [vmem:[#allocation11] sm:$0xf] %v800
    %805 = vst [vmem:[#allocation11 + $0x4] sm:$0xf] %v801
    // Predicated region
    $region42: #{tpu_custom_call.1} parent=1 // pred_check
      _
    $region43: #{tpu_custom_call.1} parent=1 // pred_check_branch
      %807 = sbr.rel (0) target = $region45
    $region44: #{tpu_custom_call.1} parent=1 // pred_region
      %s809 = ssub.s32 128, 64
      %810 = vsyncadd [#allocation5], %s809
      %s811 = sshll.u32 [#allocation11], 4
      %s812 = int_to_ptr.vmem [resolvable:$true] %s811
      %817 = dma.vmem_to_hbm [thread:$0]  %s812, 64, %s6, [#allocation5], 64, 64, 4
    $region45: #{tpu_custom_call.1} parent=1 // pred_fallthru
      _
    // Predicated region
    $region46: #{tpu_custom_call.1} parent=1 // pred_check
      _
    $region47: #{tpu_custom_call.1} parent=1 // pred_check_branch
      %819 = sbr.rel (0) target = $region49
    $region48: #{tpu_custom_call.1} parent=1 // pred_region
      %820 = dma.done [#allocation5], 128
    $region49: #{tpu_custom_call.1} parent=1 // pred_fallthru
      _
    %821 = vsyncpa [#allocation4], 1
    %822 = vsyncpa [#allocation9], 1
    %823 = vsyncpa [#allocation5], 1
    %824 = vsyncpa [#allocation6], 1

</llo_original>
